<compile_context>
chip_gen: v7x
topology: tpu7x:2x2x1
jax: 0.10.0
libtpu: 0.0.40
codegen_flags: <defaults>
</compile_context>

<pallas_src>
import functools
import math

import jax
import jax.numpy as jnp
from jax import lax
from jax.experimental import pallas as pl
from jax.experimental.pallas import tpu as pltpu


# ----------------------------------------------------------------------------
# Utilities
# ----------------------------------------------------------------------------
def _round_up(n, m):
    return ((n + m - 1) // m) * m


@functools.lru_cache(maxsize=1)
def _vmem_limit_bytes():
    """Generation-aware scoped-VMEM limit, leaving headroom for compiler scratch."""
    try:
        cap = int(pltpu.get_tpu_info().vmem_capacity_bytes)
    except Exception:
        cap = 64 * 1024 * 1024          # conservative (v7x-sized) fallback
    return int(max(32 * 1024 * 1024, cap - 24 * 1024 * 1024))


def _pick_time_chunk(T, B, H, budget_bytes=8 * 1024 * 1024):
    """Largest divisor of T whose double-buffered per-chunk streams fit the budget."""
    per_t = B * (4 * H + 4 * H + H + H) * 2 * 2   # gx_f + gx_b + y_f + y_b, bf16, x2 buffers
    target = max(1, budget_bytes // max(per_t, 1))
    if T <= target:
        return T
    for tc in range(int(target), 0, -1):
        if T % tc == 0:
            return tc
    return 1


# ----------------------------------------------------------------------------
# Pallas kernels
# ----------------------------------------------------------------------------
def _make_linear_kernel(n_x, n_o):
    """Row tile of: out[j] = sum_i x[i] @ w[i][j] + b[j]  (f32 MXU accumulation)."""
    def kernel(*refs):
        xs = refs[:n_x]
        ws = refs[n_x:n_x + n_x * n_o]
        bs = refs[n_x + n_x * n_o:n_x + n_x * n_o + n_o]
        outs = refs[n_x + n_x * n_o + n_o:]
        for j in range(n_o):
            acc = bs[j][...]                                   # (1, O_j) f32, broadcasts
            for i in range(n_x):
                acc = acc + jnp.dot(xs[i][...], ws[i * n_o + j][...],
                                    preferred_element_type=jnp.float32)
            outs[j][...] = acc.astype(outs[j].dtype)
    return kernel


def _lstm_cell(gates, c_prev, H):
    """Gate columns pre-permuted to (i, f, o, g): one fused sigmoid + one tanh. All f32."""
    ifo = jax.nn.sigmoid(gates[:, :3 * H])
    g = jnp.tanh(gates[:, 3 * H:])
    c_new = ifo[:, H:2 * H] * c_prev + ifo[:, :H] * g
    h_new = ifo[:, 2 * H:] * jnp.tanh(c_new)
    return h_new, c_new


def _bilstm_chunk_kernel(gxf_ref, gxb_ref, whhf_ref, whhb_ref,
                         yf_ref, yb_ref, hf, cf, hb, cb):
    """Fused bidirectional recurrence over one time chunk.

    gxf_ref: (TC, B, 4H) bf16  forward-direction gates chunk (chunk index c).
    gxb_ref: (TC, B, 4H) bf16  backward-direction gates chunk (chunk index nt-1-c).
    whh_*:   (H, 4H)     bf16  hidden->gates weights.
    yf_ref:  (TC, B, H)  bf16  forward hidden output chunk c.
    yb_ref:  (TC, B, H)  bf16  backward hidden output chunk nt-1-c.
    hf/cf/hb/cb: (B, H)  f32   recurrent state, carried across grid steps in scratch.
    """
    TC = gxf_ref.shape[0]
    H = hf.shape[1]

    @pl.when(pl.program_id(0) == 0)
    def _():
        hf[...] = jnp.zeros_like(hf)
        cf[...] = jnp.zeros_like(cf)
        hb[...] = jnp.zeros_like(hb)
        cb[...] = jnp.zeros_like(cb)

    def step(tt, carry):
        tr = TC - 1 - tt

        # Forward direction: global time increases with tt.
        gates_f = gxf_ref[tt].astype(jnp.float32) + jnp.dot(
            hf[...].astype(jnp.bfloat16), whhf_ref[...],
            preferred_element_type=jnp.float32)
        h_f, c_f = _lstm_cell(gates_f, cf[...], H)
        hf[...] = h_f
        cf[...] = c_f
        yf_ref[tt] = h_f.astype(yf_ref.dtype)

        # Backward direction: its chunk is visited in reverse global time, so walk
        # the chunk from the end.
        gates_b = gxb_ref[tr].astype(jnp.float32) + jnp.dot(
            hb[...].astype(jnp.bfloat16), whhb_ref[...],
            preferred_element_type=jnp.float32)
        h_b, c_b = _lstm_cell(gates_b, cb[...], H)
        hb[...] = h_b
        cb[...] = c_b
        yb_ref[tr] = h_b.astype(yb_ref.dtype)
        return carry

    lax.fori_loop(0, TC, step, 0, unroll=4)


def _unilstm_chunk_kernel(gx_ref, whh_ref, y_ref, h_scr, c_scr):
    """Unidirectional recurrence over one time chunk (state carried in scratch)."""
    TC = gx_ref.shape[0]
    H = h_scr.shape[1]

    @pl.when(pl.program_id(0) == 0)
    def _():
        h_scr[...] = jnp.zeros_like(h_scr)
        c_scr[...] = jnp.zeros_like(c_scr)

    def step(tt, carry):
        gates = gx_ref[tt].astype(jnp.float32) + jnp.dot(
            h_scr[...].astype(jnp.bfloat16), whh_ref[...],
            preferred_element_type=jnp.float32)
        h_new, c_new = _lstm_cell(gates, c_scr[...], H)
        h_scr[...] = h_new
        c_scr[...] = c_new
        y_ref[tt] = h_new.astype(y_ref.dtype)
        return carry

    lax.fori_loop(0, TC, step, 0, unroll=4)


# ----------------------------------------------------------------------------
# Wrappers
# ----------------------------------------------------------------------------
def fused_linear(xs, ws, bs, out_dtype, tm=512):
    """xs[i]: (N, F_i) bf16; ws[i][j]: (F_i, O_j) bf16; bs[j]: (1, O_j) f32.

    Returns a tuple of (N, O_j) arrays of out_dtype. Row-tiled ("parallel") grid so x and
    the outputs stream through VMEM; weights/biases stay resident (constant index_map).
    """
    n_x, n_o = len(xs), len(bs)
    N = xs[0].shape[0]
    tm = min(tm, _round_up(N, 8))
    grid = (pl.cdiv(N, tm),)

    flat_ws = [ws[i][j] for i in range(n_x) for j in range(n_o)]
    in_specs = [pl.BlockSpec((tm, x.shape[1]), lambda i: (i, 0)) for x in xs]
    in_specs += [pl.BlockSpec(w.shape, lambda i: (0, 0)) for w in flat_ws]
    in_specs += [pl.BlockSpec(b.shape, lambda i: (0, 0)) for b in bs]

    out_specs = tuple(pl.BlockSpec((tm, bs[j].shape[1]), lambda i: (i, 0))
                      for j in range(n_o))
    out_shape = tuple(jax.ShapeDtypeStruct((N, bs[j].shape[1]), out_dtype)
                      for j in range(n_o))

    return pl.pallas_call(
        _make_linear_kernel(n_x, n_o),
        out_shape=out_shape,
        grid_spec=pltpu.PrefetchScalarGridSpec(
            num_scalar_prefetch=0, grid=grid,
            in_specs=in_specs, out_specs=out_specs),
        compiler_params=pltpu.CompilerParams(
            dimension_semantics=("parallel",),
            vmem_limit_bytes=_vmem_limit_bytes()),
    )(*xs, *flat_ws, *bs)


def bilstm_layer(gx_f, gx_b, whh_f, whh_b, hidden_dim):
    """gx_f/gx_b: (T, B, 4H) bf16 -> (y_f, y_b), each (T, B, H) bf16."""
    T, B, _ = gx_f.shape
    H = hidden_dim
    tc = _pick_time_chunk(T, B, H)
    nt = T // tc

    in_specs = [
        pl.BlockSpec((tc, B, 4 * H), lambda c: (c, 0, 0)),            # fwd gates, chunk c
        pl.BlockSpec((tc, B, 4 * H), lambda c: (nt - 1 - c, 0, 0)),   # bwd gates, reversed
        pl.BlockSpec(whh_f.shape, lambda c: (0, 0)),
        pl.BlockSpec(whh_b.shape, lambda c: (0, 0)),
    ]
    out_specs = (
        pl.BlockSpec((tc, B, H), lambda c: (c, 0, 0)),
        pl.BlockSpec((tc, B, H), lambda c: (nt - 1 - c, 0, 0)),
    )
    out_shape = (jax.ShapeDtypeStruct((T, B, H), jnp.bfloat16),
                 jax.ShapeDtypeStruct((T, B, H), jnp.bfloat16))

    return pl.pallas_call(
        _bilstm_chunk_kernel,
        out_shape=out_shape,
        grid_spec=pltpu.PrefetchScalarGridSpec(
            num_scalar_prefetch=0, grid=(nt,),
            in_specs=in_specs, out_specs=out_specs,
            scratch_shapes=[pltpu.VMEM((B, H), jnp.float32)] * 4),
        compiler_params=pltpu.CompilerParams(
            dimension_semantics=("arbitrary",),            # state carried across chunks
            vmem_limit_bytes=_vmem_limit_bytes()),
    )(gx_f, gx_b, whh_f, whh_b)


def unilstm_layer(gx, whh, hidden_dim):
    """gx: (T, B, 4H) bf16 -> (T, B, H) bf16."""
    T, B, _ = gx.shape
    H = hidden_dim
    tc = _pick_time_chunk(T, B, H)
    nt = T // tc

    return pl.pallas_call(
        _unilstm_chunk_kernel,
        out_shape=jax.ShapeDtypeStruct((T, B, H), jnp.bfloat16),
        grid_spec=pltpu.PrefetchScalarGridSpec(
            num_scalar_prefetch=0, grid=(nt,),
            in_specs=[pl.BlockSpec((tc, B, 4 * H), lambda c: (c, 0, 0)),
                      pl.BlockSpec(whh.shape, lambda c: (0, 0))],
            out_specs=pl.BlockSpec((tc, B, H), lambda c: (c, 0, 0)),
            scratch_shapes=[pltpu.VMEM((B, H), jnp.float32)] * 2),
        compiler_params=pltpu.CompilerParams(
            dimension_semantics=("arbitrary",),
            vmem_limit_bytes=_vmem_limit_bytes()),
    )(gx, whh)


# ----------------------------------------------------------------------------
# Parameter init (deterministic; shapes match the PyTorch module)
# ----------------------------------------------------------------------------
def _ifgo_to_ifog(w, H):
    """Permute gate columns from PyTorch order (i, f, g, o) to kernel order (i, f, o, g)."""
    i, f, g, o = (w[..., k * H:(k + 1) * H] for k in range(4))
    return jnp.concatenate([i, f, o, g], axis=-1)


def init_params(key, input_dim, embedding_dim, hidden_dim, output_dim,
                n_layers, bidirectional, pad_idx):
    keys = iter(jax.random.split(key, 256))
    H = hidden_dim
    params = {}

    # nn.Embedding(input_dim, embedding_dim, padding_idx=pad_idx)
    emb = jax.random.normal(next(keys), (input_dim, embedding_dim), jnp.float32)
    emb = emb.at[pad_idx].set(0.0)
    params["embedding"] = emb

    num_dirs = 2 if bidirectional else 1
    stdv = 1.0 / math.sqrt(H)

    def make_dir(in_size):
        # (Checkpoint import would transpose PyTorch's (4H, in)/(4H, H) into this layout.)
        w_ih = jax.random.uniform(next(keys), (in_size, 4 * H), jnp.float32, -stdv, stdv)
        w_hh = jax.random.uniform(next(keys), (H, 4 * H), jnp.float32, -stdv, stdv)
        b_ih = jax.random.uniform(next(keys), (1, 4 * H), jnp.float32, -stdv, stdv)
        b_hh = jax.random.uniform(next(keys), (1, 4 * H), jnp.float32, -stdv, stdv)
        return (_ifgo_to_ifog(w_ih, H), _ifgo_to_ifog(w_hh, H),
                _ifgo_to_ifog(b_ih + b_hh, H))          # combined bias (PyTorch semantics)

    layers = []
    for layer in range(n_layers):
        in_size = embedding_dim if layer == 0 else H * num_dirs
        if bidirectional:
            wf, whf, bf_ = make_dir(in_size)
            wb, whb, bb_ = make_dir(in_size)
            if layer == 0:
                w_ih = ((wf.astype(jnp.bfloat16), wb.astype(jnp.bfloat16)),)
            else:
                # Inputs arrive as separate (y_fwd, y_bwd) streams: split each direction's
                # input-projection weight by input half so no concat pass is ever needed.
                w_ih = ((wf[:H].astype(jnp.bfloat16), wb[:H].astype(jnp.bfloat16)),
                        (wf[H:].astype(jnp.bfloat16), wb[H:].astype(jnp.bfloat16)))
            layers.append({
                "w_ih": w_ih,                       # ws[input_idx][direction]
                "b": (bf_, bb_),                    # f32
                "whh_f": whf.astype(jnp.bfloat16),
                "whh_b": whb.astype(jnp.bfloat16),
            })
        else:
            w, wh, b = make_dir(in_size)
            layers.append({
                "w_ih": ((w.astype(jnp.bfloat16),),),
                "b": (b,),
                "whh": wh.astype(jnp.bfloat16),
            })
    params["lstm_layers"] = layers

    fc_in = H * num_dirs
    bound = 1.0 / math.sqrt(fc_in)
    fc_w = jax.random.uniform(next(keys), (fc_in, output_dim), jnp.float32, -bound, bound)
    fc_b = jax.random.uniform(next(keys), (1, output_dim), jnp.float32, -bound, bound)
    if bidirectional:
        params["fc_ws"] = ((fc_w[:H].astype(jnp.bfloat16),),
                           (fc_w[H:].astype(jnp.bfloat16),))
    else:
        params["fc_ws"] = ((fc_w.astype(jnp.bfloat16),),)
    params["fc_b"] = (fc_b,)
    return params


# ----------------------------------------------------------------------------
# Full forward pass (matches LSTM.forward in eval mode)
# ----------------------------------------------------------------------------
def blstm_forward(text, params, bidirectional=True):
    # Embedding lookup (gather glue in plain JAX); dropout = identity (eval mode).
    x = params["embedding"][text]                                    # (T, B, E) f32
    T, B = text.shape

    xs = (x.reshape(T * B, x.shape[-1]).astype(jnp.bfloat16),)
    for layer in params["lstm_layers"]:
        if bidirectional:
            H = layer["whh_f"].shape[0]
            # One row-tiled MXU pass produces both directions' gate pre-activations (bf16).
            gx_f, gx_b = fused_linear(xs, layer["w_ih"], layer["b"],
                                      out_dtype=jnp.bfloat16)        # (T*B, 4H) each
            y_f, y_b = bilstm_layer(gx_f.reshape(T, B, 4 * H),
                                    gx_b.reshape(T, B, 4 * H),
                                    layer["whh_f"], layer["whh_b"], H)
            xs = (y_f.reshape(T * B, H), y_b.reshape(T * B, H))      # bf16, no concat
        else:
            H = layer["whh"].shape[0]
            (gx,) = fused_linear(xs, layer["w_ih"], layer["b"], out_dtype=jnp.bfloat16)
            y = unilstm_layer(gx.reshape(T, B, 4 * H), layer["whh"], H)
            xs = (y.reshape(T * B, H),)

    # fc on dropout(outputs); dropout = identity (eval mode).
    (out,) = fused_linear(xs, params["fc_ws"], params["fc_b"], out_dtype=jnp.float32)
    return out.reshape(T, B, -1)                                     # (T, B, output_dim)


# ----------------------------------------------------------------------------
if __name__ == "__main__":
    INPUT_DIM = 50        # vocab size
    EMBEDDING_DIM = 32
    HIDDEN_DIM = 32
    OUTPUT_DIM = 4
    N_LAYERS = 2
    BIDIRECTIONAL = True
    PAD_IDX = 0
    SEQ_LEN, BATCH = 8, 2

    key = jax.random.PRNGKey(0)
    k_param, k_text = jax.random.split(key)

    params = init_params(k_param, INPUT_DIM, EMBEDDING_DIM, HIDDEN_DIM,
                         OUTPUT_DIM, N_LAYERS, BIDIRECTIONAL, PAD_IDX)

    text = jax.random.randint(k_text, (SEQ_LEN, BATCH), 0, INPUT_DIM,
                              dtype=jnp.int32)        # (T, B) token ids

    preds = blstm_forward(text, params, bidirectional=BIDIRECTIONAL)
    preds = jax.block_until_ready(preds)

    assert preds.shape == (SEQ_LEN, BATCH, OUTPUT_DIM), preds.shape
    assert preds.dtype == jnp.float32
    print("KERNEL_OK")
</pallas_src>

<mosaic_0001>
module attributes {stable_mosaic.version = 11 : i64} {
  func.func @kernel(%arg0: i32, %arg1: memref<16x32xbf16, #tpu.memory_space<vmem>>, %arg2: memref<32x128xbf16, #tpu.memory_space<vmem>>, %arg3: memref<32x128xbf16, #tpu.memory_space<vmem>>, %arg4: memref<1x128xf32, #tpu.memory_space<vmem>>, %arg5: memref<1x128xf32, #tpu.memory_space<vmem>>, %arg6: memref<16x128xbf16, #tpu.memory_space<vmem>>, %arg7: memref<16x128xbf16, #tpu.memory_space<vmem>>) attributes {dimension_semantics = [#tpu.dimension_semantics<parallel>], iteration_bounds = array<i64: 1>, scalar_prefetch = 0 : i64, scratch_operands = 0 : i64, tpu.core_type = #tpu.core_type<tc>, window_params = [{transform_indices = @transform_0, window_bounds = array<i64: 16, 32>}, {pipeline_mode = #tpu.pipeline_mode<synchronous>, transform_indices = @transform_1, window_bounds = array<i64: 32, 128>}, {pipeline_mode = #tpu.pipeline_mode<synchronous>, transform_indices = @transform_2, window_bounds = array<i64: 32, 128>}, {pipeline_mode = #tpu.pipeline_mode<synchronous>, transform_indices = @transform_3, window_bounds = array<i64: 1, 128>}, {pipeline_mode = #tpu.pipeline_mode<synchronous>, transform_indices = @transform_4, window_bounds = array<i64: 1, 128>}, {transform_indices = @transform_5, window_bounds = array<i64: 16, 128>}, {transform_indices = @transform_6, window_bounds = array<i64: 16, 128>}]} {
    %c0 = arith.constant 0 : index
    %c0_0 = arith.constant 0 : index
    %0 = vector.load %arg4[%c0, %c0_0] : memref<1x128xf32, #tpu.memory_space<vmem>>, vector<1x128xf32>
    %c0_1 = arith.constant 0 : index
    %c0_2 = arith.constant 0 : index
    %1 = vector.load %arg1[%c0_1, %c0_2] : memref<16x32xbf16, #tpu.memory_space<vmem>>, vector<16x32xbf16>
    %c0_3 = arith.constant 0 : index
    %c0_4 = arith.constant 0 : index
    %2 = vector.load %arg2[%c0_3, %c0_4] : memref<32x128xbf16, #tpu.memory_space<vmem>>, vector<32x128xbf16>
    %cst = arith.constant dense<0.000000e+00> : vector<16x128xf32>
    %3 = tpu.matmul %1, %2, %cst {dimension_numbers = #tpu.dot_dimension_numbers<[1], [0], [0], [1], [0, 0, 1, 1], [], []>} : vector<16x32xbf16>, vector<32x128xbf16>, vector<16x128xf32> -> vector<16x128xf32>
    %4 = vector.broadcast %0 : vector<1x128xf32> to vector<16x128xf32>
    %5 = arith.addf %4, %3 : vector<16x128xf32>
    %6 = arith.truncf %5 : vector<16x128xf32> to vector<16x128xbf16>
    %c0_5 = arith.constant 0 : index
    %c0_6 = arith.constant 0 : index
    %7 = vector.load %arg6[%c0_5, %c0_6] : memref<16x128xbf16, #tpu.memory_space<vmem>>, vector<16x128xbf16>
    tpu.vector_store %arg6[%c0_5, %c0_6], %6 {strides = array<i32>} : memref<16x128xbf16, #tpu.memory_space<vmem>>, vector<16x128xbf16>,
    %c0_7 = arith.constant 0 : index
    %c0_8 = arith.constant 0 : index
    %8 = vector.load %arg5[%c0_7, %c0_8] : memref<1x128xf32, #tpu.memory_space<vmem>>, vector<1x128xf32>
    %c0_9 = arith.constant 0 : index
    %c0_10 = arith.constant 0 : index
    %9 = vector.load %arg1[%c0_9, %c0_10] : memref<16x32xbf16, #tpu.memory_space<vmem>>, vector<16x32xbf16>
    %c0_11 = arith.constant 0 : index
    %c0_12 = arith.constant 0 : index
    %10 = vector.load %arg3[%c0_11, %c0_12] : memref<32x128xbf16, #tpu.memory_space<vmem>>, vector<32x128xbf16>
    %cst_13 = arith.constant dense<0.000000e+00> : vector<16x128xf32>
    %11 = tpu.matmul %9, %10, %cst_13 {dimension_numbers = #tpu.dot_dimension_numbers<[1], [0], [0], [1], [0, 0, 1, 1], [], []>} : vector<16x32xbf16>, vector<32x128xbf16>, vector<16x128xf32> -> vector<16x128xf32>
    %12 = vector.broadcast %8 : vector<1x128xf32> to vector<16x128xf32>
    %13 = arith.addf %12, %11 : vector<16x128xf32>
    %14 = arith.truncf %13 : vector<16x128xf32> to vector<16x128xbf16>
    %c0_14 = arith.constant 0 : index
    %c0_15 = arith.constant 0 : index
    %15 = vector.load %arg7[%c0_14, %c0_15] : memref<16x128xbf16, #tpu.memory_space<vmem>>, vector<16x128xbf16>
    tpu.vector_store %arg7[%c0_14, %c0_15], %14 {strides = array<i32>} : memref<16x128xbf16, #tpu.memory_space<vmem>>, vector<16x128xbf16>,
    return
  }
  func.func @transform_0(%arg0: i32) -> (i32, i32) {
    %c0_i32 = arith.constant 0 : i32
    %c0_i32_0 = arith.constant 0 : i32
    return %arg0, %c0_i32 : i32, i32
  }
  func.func @transform_1(%arg0: i32) -> (i32, i32) {
    %c0_i32 = arith.constant 0 : i32
    %c0_i32_0 = arith.constant 0 : i32
    %c0_i32_1 = arith.constant 0 : i32
    return %c0_i32, %c0_i32_0 : i32, i32
  }
  func.func @transform_2(%arg0: i32) -> (i32, i32) {
    %c0_i32 = arith.constant 0 : i32
    %c0_i32_0 = arith.constant 0 : i32
    %c0_i32_1 = arith.constant 0 : i32
    return %c0_i32, %c0_i32_0 : i32, i32
  }
  func.func @transform_3(%arg0: i32) -> (i32, i32) {
    %c0_i32 = arith.constant 0 : i32
    %c0_i32_0 = arith.constant 0 : i32
    %c0_i32_1 = arith.constant 0 : i32
    return %c0_i32, %c0_i32_0 : i32, i32
  }
  func.func @transform_4(%arg0: i32) -> (i32, i32) {
    %c0_i32 = arith.constant 0 : i32
    %c0_i32_0 = arith.constant 0 : i32
    %c0_i32_1 = arith.constant 0 : i32
    return %c0_i32, %c0_i32_0 : i32, i32
  }
  func.func @transform_5(%arg0: i32) -> (i32, i32) {
    %c0_i32 = arith.constant 0 : i32
    %c0_i32_0 = arith.constant 0 : i32
    return %arg0, %c0_i32 : i32, i32
  }
  func.func @transform_6(%arg0: i32) -> (i32, i32) {
    %c0_i32 = arith.constant 0 : i32
    %c0_i32_0 = arith.constant 0 : i32
    return %arg0, %c0_i32 : i32, i32
  }
}

</mosaic_0001>

<llo_original>
// kernel: tpu_custom_call.1
$region0: #{tpu_custom_call.1}
  #allocation0 [shape = 'u32[]', space=smem, size = 0x4, offset = 0x4, fixed_abs, tag = 'smem constant byte address 0x4 - core index']
  #allocation1 [shape = 'u32[144,128]{1,0:T(1,128)}', space=vmem, size = 0x12000, scoped, tag = 'internal scratch']
  %s0 = inlined_call_operand.hbm [shape: bf16[16,32], index: 0, kind: input, shape index: {}]
  %s1 = inlined_call_operand.hbm [shape: bf16[32,128], index: 1, kind: input, shape index: {}]
  %s2 = inlined_call_operand.hbm [shape: bf16[32,128], index: 2, kind: input, shape index: {}]
  %s3 = inlined_call_operand.vmem [shape: f32[1,128], index: 3, kind: input, shape index: {}]
  %s4 = inlined_call_operand.vmem [shape: f32[1,128], index: 4, kind: input, shape index: {}]
  %s5 = inlined_call_operand.hbm [shape: bf16[16,128], index: 5, kind: output, shape index: {0}]
  %s6 = inlined_call_operand.hbm [shape: bf16[16,128], index: 6, kind: output, shape index: {1}]
  %7 = xla_tuple %s5, %s6
  %s8 = sld [smem:[#allocation0]]
  $region50: #{tpu_custom_call.1} parent=0
    _
  %s10 = ssub.s32 1, %s8
  %s11 = scalar_select 0, %s10, %s8
  $region1: #{tpu_custom_call.1} parent=0
    #allocation2 [shape = 'u8[4096]{0}', space=vmem, size = 0x1000, scoped, tag = 'input window, operand 0, single buffered']
    #allocation3 [shape = 's32[1]{0}', space=sflag, size = 0x4, scoped, tag = 'scoped memory for tpu_custom_call.1']
    #allocation4 [shape = 's32[1]{0}', space=sflag, size = 0x4, scoped, tag = 'scoped memory for tpu_custom_call.1']
    #allocation5 [shape = 'u8[8192]{0}', space=vmem, size = 0x2000, scoped, tag = 'input window, operand 1, single buffered']
    #allocation6 [shape = 's32[1]{0}', space=sflag, size = 0x4, scoped, tag = 'scoped memory for tpu_custom_call.1']
    #allocation7 [shape = 'u8[8192]{0}', space=vmem, size = 0x2000, scoped, tag = 'input window, operand 2, single buffered']
    #allocation8 [shape = 'u8[4096]{0}', space=vmem, size = 0x1000, scoped, tag = 'output window, operand 0, single buffered']
    #allocation9 [shape = 'u8[4096]{0}', space=vmem, size = 0x1000, scoped, tag = 'output window, operand 1, single buffered']
    #allocation10 [shape = 's32[1]{0}', space=sflag, size = 0x4, scoped, tag = 'scoped memory for tpu_custom_call.1']
    %12 = vsyncpa [#allocation3], 0
    %13 = vsyncpa [#allocation6], 0
    %14 = vsyncpa [#allocation4], 0
    %15 = vsyncpa [#allocation10], 0
    // Predicated region
    $region2: #{tpu_custom_call.1} parent=1 // pred_check
      _
    $region3: #{tpu_custom_call.1} parent=1 // pred_check_branch
      %17 = sbr.rel (0) target = $region5
    $region4: #{tpu_custom_call.1} parent=1 // pred_region
      %s19 = ssub.s32 128, 128
      %20 = vsyncadd [#allocation3], %s19
      %s21 = sshll.u32 [#allocation2], 4
      %s22 = int_to_ptr.vmem [resolvable:$true] %s21
      %27 = dma.hbm_to_vmem [thread:$0]  %s0, 128, %s22, [#allocation3], 64, 64, 4
    $region5: #{tpu_custom_call.1} parent=1 // pred_fallthru
      _
    // Predicated region
    $region6: #{tpu_custom_call.1} parent=1 // pred_check
      _
    $region7: #{tpu_custom_call.1} parent=1 // pred_check_branch
      %29 = sbr.rel (0) target = $region9
    $region8: #{tpu_custom_call.1} parent=1 // pred_region
      %s31 = ssub.s32 256, 256
      %32 = vsyncadd [#allocation6], %s31
      %s33 = sshll.u32 [#allocation5], 4
      %s34 = int_to_ptr.vmem [resolvable:$true] %s33
      %39 = dma.hbm_to_vmem [thread:$0]  %s1, 256, %s34, [#allocation6], 64, 64, 4
    $region9: #{tpu_custom_call.1} parent=1 // pred_fallthru
      _
    // Predicated region
    $region10: #{tpu_custom_call.1} parent=1 // pred_check
      _
    $region11: #{tpu_custom_call.1} parent=1 // pred_check_branch
      %41 = sbr.rel (0) target = $region13
    $region12: #{tpu_custom_call.1} parent=1 // pred_region
      %s43 = ssub.s32 256, 256
      %44 = vsyncadd [#allocation6], %s43
      %s45 = sshll.u32 [#allocation7], 4
      %s46 = int_to_ptr.vmem [resolvable:$true] %s45
      %51 = dma.hbm_to_vmem [thread:$0]  %s2, 256, %s46, [#allocation6], 64, 64, 4
    $region13: #{tpu_custom_call.1} parent=1 // pred_fallthru
      _
    // Predicated region
    $region14: #{tpu_custom_call.1} parent=1 // pred_check
      _
    $region15: #{tpu_custom_call.1} parent=1 // pred_check_branch
      %53 = sbr.rel (0) target = $region17
    $region16: #{tpu_custom_call.1} parent=1 // pred_region
      _
    $region17: #{tpu_custom_call.1} parent=1 // pred_fallthru
      _
    // Predicated region
    $region18: #{tpu_custom_call.1} parent=1 // pred_check
      _
    $region19: #{tpu_custom_call.1} parent=1 // pred_check_branch
      %55 = sbr.rel (0) target = $region21
    $region20: #{tpu_custom_call.1} parent=1 // pred_region
      _
    $region21: #{tpu_custom_call.1} parent=1 // pred_fallthru
      _
    // Predicated region
    $region22: #{tpu_custom_call.1} parent=1 // pred_check
      _
    $region23: #{tpu_custom_call.1} parent=1 // pred_check_branch
      %57 = sbr.rel (0) target = $region25
    $region24: #{tpu_custom_call.1} parent=1 // pred_region
      %58 = dma.done [#allocation3], 128
    $region25: #{tpu_custom_call.1} parent=1 // pred_fallthru
      _
    // Predicated region
    $region26: #{tpu_custom_call.1} parent=1 // pred_check
      _
    $region27: #{tpu_custom_call.1} parent=1 // pred_check_branch
      %60 = sbr.rel (0) target = $region29
    $region28: #{tpu_custom_call.1} parent=1 // pred_region
      %61 = dma.done [#allocation6], 256
    $region29: #{tpu_custom_call.1} parent=1 // pred_fallthru
      _
    // Predicated region
    $region30: #{tpu_custom_call.1} parent=1 // pred_check
      _
    $region31: #{tpu_custom_call.1} parent=1 // pred_check_branch
      %63 = sbr.rel (0) target = $region33
    $region32: #{tpu_custom_call.1} parent=1 // pred_region
      %64 = dma.done [#allocation6], 256
    $region33: #{tpu_custom_call.1} parent=1 // pred_fallthru
      _
    %v66 = vld [vmem:[%s3] sm:$0x1]
    %v67 = vld [vmem:[#allocation2] sm:$0xf]
    %v68 = vld [vmem:[#allocation2 + $0x4] sm:$0xf]
    %v69 = vld [vmem:[#allocation5] sm:$0xf]
    %v70 = vld [vmem:[#allocation5 + $0x4] sm:$0xf]
    %v71 = vld [vmem:[#allocation5 + $0x8] sm:$0xf]
    %v72 = vld [vmem:[#allocation5 + $0xc] sm:$0xf]
    %v75 = vunpack.c.l.b16 %v67
    %v76 = vunpack.c.l.b16 %v68
    %v77 = vpack.c.b16 %v76, %v75
    %v82 = vunpack.c.l.b16 %v69
    %v83 = vunpack.c.l.b16 %v70
    %v84 = vunpack.c.l.b16 %v71
    %v85 = vunpack.c.l.b16 %v72
    %v86 = vpack.c.b16 %v83, %v82
    %v87 = vpack.c.b16 %v85, %v84
    %vm90 = vcmask 261120
    %v92 = vsel %vm90, %v77, 0
    %94 = vmatprep.subr.bf16.mxu0 0
    %95 = vmatpush1.bf16.msra.mxu0 %v86
    %96 = vmatprep.subr.bf16.mxu0 0
    %97 = vmatpush1.bf16.msra.mxu0 %v87
    %98 = vmatprep.subr.bf16.mxu0 0
    %99 = vmatpush1.bf16.msra.mxu0 0
    %100 = vmatprep.subr.bf16.mxu0 0
    %101 = vmatpush1.bf16.msra.mxu0 0
    %102 = vmatprep.subr.bf16.mxu0 0
    %103 = vmatpush1.bf16.msra.mxu0 0
    %104 = vmatprep.subr.bf16.mxu0 0
    %105 = vmatpush1.bf16.msra.mxu0 0
    %106 = vmatprep.subr.bf16.mxu0 0
    %107 = vmatpush1.bf16.msra.mxu0 0
    %108 = vmatprep.subr.bf16.mxu0 0
    %109 = vmatpush1.bf16.msra.mxu0 0
    %110 = vmatprep.subr.bf16.mxu0 0
    %111 = vmatpush1.bf16.msra.mxu0 0
    %112 = vmatprep.subr.bf16.mxu0 0
    %113 = vmatpush1.bf16.msra.mxu0 0
    %114 = vmatprep.subr.bf16.mxu0 0
    %115 = vmatpush1.bf16.msra.mxu0 0
    %116 = vmatprep.subr.bf16.mxu0 0
    %117 = vmatpush1.bf16.msra.mxu0 0
    %118 = vmatprep.subr.bf16.mxu0 0
    %119 = vmatpush1.bf16.msra.mxu0 0
    %120 = vmatprep.subr.bf16.mxu0 0
    %121 = vmatpush1.bf16.msra.mxu0 0
    %122 = vmatprep.subr.bf16.mxu0 0
    %123 = vmatpush1.bf16.msra.mxu0 0
    %124 = vmatprep.subr.bf16.mxu0 0
    %125 = vmatpush1.bf16.msra.mxu0 0
    %126 = vmatprep.mubr.bf16.mxu0 0
    %127 = vmatmul.mubr.bf16.gmra.mrb[0].mxu0 %v92
    %v128 = vpop.f32.mrb[0].mxu0
    %v129 = vadd.f32 0.0, %v128
    %v130 = vpop.f32.mrb[0].mxu0
    %v131 = vpop.f32.mrb[0].mxu0
    %v132 = vadd.f32 0.0, %v131
    %v133 = vpop.f32.mrb[0].mxu0
    %134 = vdwg.mxu0
    %v136 = vlaneseq
    %v137 = vshrl.u32 %v136, 7
    %v138 = vsub.s32 0, %v137
    %v139 = vrot.slane %v66, %v138
    %v141 = vadd.f32 %v139, %v129
    %v142 = vadd.f32 %v139, %v132
    %v143 = vpack.c.bf16 %v142, %v141
    %v145 = vunpack.c.l.b16 %v143
    %v146 = vunpack.c.h.b16 %v143
    %v147 = vpack.c.b16 %v145, %v145
    %v148 = vpack.c.b16 %v146, %v146
    %151 = vst [vmem:[#allocation8] sm:$0xf] %v147
    %152 = vst [vmem:[#allocation8 + $0x4] sm:$0xf] %v148
    %v153 = vld [vmem:[%s4] sm:$0x1]
    %v154 = vld [vmem:[#allocation2] sm:$0xf]
    %v155 = vld [vmem:[#allocation2 + $0x4] sm:$0xf]
    %v156 = vld [vmem:[#allocation7] sm:$0xf]
    %v157 = vld [vmem:[#allocation7 + $0x4] sm:$0xf]
    %v158 = vld [vmem:[#allocation7 + $0x8] sm:$0xf]
    %v159 = vld [vmem:[#allocation7 + $0xc] sm:$0xf]
    %v162 = vunpack.c.l.b16 %v154
    %v163 = vunpack.c.l.b16 %v155
    %v164 = vpack.c.b16 %v163, %v162
    %v169 = vunpack.c.l.b16 %v156
    %v170 = vunpack.c.l.b16 %v157
    %v171 = vunpack.c.l.b16 %v158
    %v172 = vunpack.c.l.b16 %v159
    %v173 = vpack.c.b16 %v170, %v169
    %v174 = vpack.c.b16 %v172, %v171
    %v178 = vsel %vm90, %v164, 0
    %180 = vmatprep.subr.bf16.mxu0 0
    %181 = vmatpush1.bf16.msra.mxu0 %v173
    %182 = vmatprep.subr.bf16.mxu0 0
    %183 = vmatpush1.bf16.msra.mxu0 %v174
    %184 = vmatprep.subr.bf16.mxu0 0
    %185 = vmatpush1.bf16.msra.mxu0 0
    %186 = vmatprep.subr.bf16.mxu0 0
    %187 = vmatpush1.bf16.msra.mxu0 0
    %188 = vmatprep.subr.bf16.mxu0 0
    %189 = vmatpush1.bf16.msra.mxu0 0
    %190 = vmatprep.subr.bf16.mxu0 0
    %191 = vmatpush1.bf16.msra.mxu0 0
    %192 = vmatprep.subr.bf16.mxu0 0
    %193 = vmatpush1.bf16.msra.mxu0 0
    %194 = vmatprep.subr.bf16.mxu0 0
    %195 = vmatpush1.bf16.msra.mxu0 0
    %196 = vmatprep.subr.bf16.mxu0 0
    %197 = vmatpush1.bf16.msra.mxu0 0
    %198 = vmatprep.subr.bf16.mxu0 0
    %199 = vmatpush1.bf16.msra.mxu0 0
    %200 = vmatprep.subr.bf16.mxu0 0
    %201 = vmatpush1.bf16.msra.mxu0 0
    %202 = vmatprep.subr.bf16.mxu0 0
    %203 = vmatpush1.bf16.msra.mxu0 0
    %204 = vmatprep.subr.bf16.mxu0 0
    %205 = vmatpush1.bf16.msra.mxu0 0
    %206 = vmatprep.subr.bf16.mxu0 0
    %207 = vmatpush1.bf16.msra.mxu0 0
    %208 = vmatprep.subr.bf16.mxu0 0
    %209 = vmatpush1.bf16.msra.mxu0 0
    %210 = vmatprep.subr.bf16.mxu0 0
    %211 = vmatpush1.bf16.msra.mxu0 0
    %212 = vmatprep.mubr.bf16.mxu0 0
    %213 = vmatmul.mubr.bf16.gmra.mrb[0].mxu0 %v178
    %v214 = vpop.f32.mrb[0].mxu0
    %v215 = vadd.f32 0.0, %v214
    %v216 = vpop.f32.mrb[0].mxu0
    %v217 = vpop.f32.mrb[0].mxu0
    %v218 = vadd.f32 0.0, %v217
    %v219 = vpop.f32.mrb[0].mxu0
    %220 = vdwg.mxu0
    %v222 = vlaneseq
    %v223 = vshrl.u32 %v222, 7
    %v224 = vsub.s32 0, %v223
    %v225 = vrot.slane %v153, %v224
    %v227 = vadd.f32 %v225, %v215
    %v228 = vadd.f32 %v225, %v218
    %v229 = vpack.c.bf16 %v228, %v227
    %v231 = vunpack.c.l.b16 %v229
    %v232 = vunpack.c.h.b16 %v229
    %v233 = vpack.c.b16 %v231, %v231
    %v234 = vpack.c.b16 %v232, %v232
    %237 = vst [vmem:[#allocation9] sm:$0xf] %v233
    %238 = vst [vmem:[#allocation9 + $0x4] sm:$0xf] %v234
    // Predicated region
    $region34: #{tpu_custom_call.1} parent=1 // pred_check
      _
    $region35: #{tpu_custom_call.1} parent=1 // pred_check_branch
      %240 = sbr.rel (0) target = $region37
    $region36: #{tpu_custom_call.1} parent=1 // pred_region
      %s242 = ssub.s32 128, 128
      %243 = vsyncadd [#allocation4], %s242
      %s244 = sshll.u32 [#allocation8], 4
      %s245 = int_to_ptr.vmem [resolvable:$true] %s244
      %250 = dma.vmem_to_hbm [thread:$0]  %s245, 128, %s5, [#allocation4], 64, 64, 4
    $region37: #{tpu_custom_call.1} parent=1 // pred_fallthru
      _
    // Predicated region
    $region38: #{tpu_custom_call.1} parent=1 // pred_check
      _
    $region39: #{tpu_custom_call.1} parent=1 // pred_check_branch
      %252 = sbr.rel (0) target = $region41
    $region40: #{tpu_custom_call.1} parent=1 // pred_region
      %s254 = ssub.s32 128, 128
      %255 = vsyncadd [#allocation10], %s254
      %s256 = sshll.u32 [#allocation9], 4
      %s257 = int_to_ptr.vmem [resolvable:$true] %s256
      %262 = dma.vmem_to_hbm [thread:$0]  %s257, 128, %s6, [#allocation10], 64, 64, 4
    $region41: #{tpu_custom_call.1} parent=1 // pred_fallthru
      _
    // Predicated region
    $region42: #{tpu_custom_call.1} parent=1 // pred_check
      _
    $region43: #{tpu_custom_call.1} parent=1 // pred_check_branch
      %264 = sbr.rel (0) target = $region45
    $region44: #{tpu_custom_call.1} parent=1 // pred_region
      %265 = dma.done [#allocation4], 128
    $region45: #{tpu_custom_call.1} parent=1 // pred_fallthru
      _
    // Predicated region
    $region46: #{tpu_custom_call.1} parent=1 // pred_check
      _
    $region47: #{tpu_custom_call.1} parent=1 // pred_check_branch
      %267 = sbr.rel (0) target = $region49
    $region48: #{tpu_custom_call.1} parent=1 // pred_region
      %268 = dma.done [#allocation10], 128
    $region49: #{tpu_custom_call.1} parent=1 // pred_fallthru
      _
    %269 = vsyncpa [#allocation3], 1
    %270 = vsyncpa [#allocation6], 1
    %271 = vsyncpa [#allocation4], 1
    %272 = vsyncpa [#allocation10], 1

</llo_original>
